<compile_context>
chip_gen: v5e
topology: v5e:2x2
jax: 0.10.0
libtpu: 0.0.40
codegen_flags: <defaults>
</compile_context>

<pallas_src>
import functools
import math

import jax
import jax.numpy as jnp
from jax import lax
from jax.experimental import pallas as pl
from jax.experimental.pallas import tpu as pltpu

LN_EPS = 1e-5  # torch.nn.LayerNorm default


def _layer_norm(x, gamma, beta):
    """Single-pass LayerNorm over the last axis (mean + E[x^2])."""
    mu = jnp.mean(x, axis=-1, keepdims=True)
    ex2 = jnp.mean(x * x, axis=-1, keepdims=True)
    var = jnp.maximum(ex2 - mu * mu, 0.0)
    return (x - mu) * lax.rsqrt(var + LN_EPS) * gamma + beta


# --------------------------------------------------------------------------- #
# Phase 1: image projection + img_norm + (degenerate) attention path, fused.
# --------------------------------------------------------------------------- #
def img_upd_kernel(obs_ref, wproj_ref, vec_ref, upd_ref, *, pre_dtype):
    # obs_ref:   (TBI, emb_dim)          activations (cast to bf16 for MXU)
    # wproj_ref: (emb_dim, D)  bf16      resident across the grid (index (0,0))
    # vec_ref:   (5, D)        f32       [proj_b, img_g, img_b, att_g, att_b]
    # upd_ref:   (TBI, D)      f32       attention_norm(clip(clip(img_vlm)*100))
    vec = vec_ref[...]
    x = obs_ref[...].astype(jnp.bfloat16)
    y = jnp.dot(x, wproj_ref[...], preferred_element_type=jnp.float32)
    img = _layer_norm(y + vec[0:1, :], vec[1:2, :], vec[2:3, :])       # img_norm
    # Degenerate attention: softmax over identical key rows is uniform, so
    # attn @ value == clip(img_vlm, -10, 10).
    upd = jnp.clip(img, -10.0, 10.0)
    upd = jnp.clip(upd * 100.0, -1000.0, 1000.0)
    upd = upd.astype(pre_dtype).astype(jnp.float32)                    # ref casts to pre dtype
    upd_ref[...] = _layer_norm(upd, vec[3:4, :], vec[4:5, :])          # attention_norm


# --------------------------------------------------------------------------- #
# Phase 2: category-grouped fusion GEMM (MoE-style).
# --------------------------------------------------------------------------- #
def fused_group_kernel(tile_cat_ref, x_ref, w_ref, b_ref, ln_ref, o_ref):
    # x_ref:  (TM, 2D)    bf16   grouped/padded LHS rows: [pre_row ++ upd_row]
    # w_ref:  (1, 2D, D)  bf16   fusion W for this tile's category
    # b_ref:  (1, 1, D)   f32    fusion bias for this tile's category
    # ln_ref: (2, D)      f32    [fus_g, fus_b]
    del tile_cat_ref  # only consumed by the index_maps
    fused = jnp.dot(x_ref[...], w_ref[0], preferred_element_type=jnp.float32)
    fused = fused + b_ref[0]
    ln = ln_ref[...]
    o_ref[...] = _layer_norm(fused, ln[0:1, :], ln[1:2, :]).astype(o_ref.dtype)


def vlm_updater(obs_feat, pre_vlm_emb, cat_ids, params, *, tile_items=None):
    """obs_feat: (B,1,emb_dim), pre_vlm_emb: (B,N,D), cat_ids: (B,) int32."""
    B, N, D = pre_vlm_emb.shape
    emb_dim = obs_feat.shape[-1]
    num_cat = params["fusion_W"].shape[0]
    pre_dtype = pre_vlm_emb.dtype
    cat_ids = cat_ids.astype(jnp.int32)

    # ---------------- Phase 1: per-item upd rows (B, D), tiled over B. ----------------
    vec5 = jnp.stack(
        [params["proj_b"][0], params["img_g"][0], params["img_b"][0],
         params["att_g"][0], params["att_b"][0]]
    ).astype(jnp.float32)                                               # (5, D)
    obs2d = obs_feat[:, 0, :]
    tbi = B if B <= 512 else 512
    nb = -(-B // tbi)
    upd = pl.pallas_call(
        functools.partial(img_upd_kernel, pre_dtype=pre_dtype),
        grid=(nb,),
        in_specs=[
            pl.BlockSpec((tbi, emb_dim), lambda i: (i, 0)),
            pl.BlockSpec((emb_dim, D), lambda i: (0, 0)),   # resident weight
            pl.BlockSpec((5, D), lambda i: (0, 0)),
        ],
        out_specs=pl.BlockSpec((tbi, D), lambda i: (i, 0)),
        out_shape=jax.ShapeDtypeStruct((B, D), jnp.float32),
        compiler_params=pltpu.CompilerParams(dimension_semantics=("parallel",)),
    )(obs2d, params["proj_W"], vec5)                                    # (B, D) f32

    # ---------------- Group bookkeeping (all static shapes, cheap B-length ops). -------
    if tile_items is None:
        tile_items = max(1, 256 // max(N, 1))                 # aim for ~256 rows / tile
    TB = int(max(1, min(int(tile_items), B)))
    step = 16 // math.gcd(N, 16)                              # keep TM a multiple of 16
    TB = max(step, (TB // step) * step)
    TM = TB * N
    num_tiles = (B + TB - 1) // TB + num_cat                  # static upper bound
    B_pad = num_tiles * TB

    order = jnp.argsort(cat_ids).astype(jnp.int32)            # visit cats in order
    cat_sorted = cat_ids[order]
    counts = jnp.bincount(cat_ids, length=num_cat)            # (C,)
    tiles_per_cat = (counts + TB - 1) // TB
    pad_start = ((jnp.cumsum(tiles_per_cat) - tiles_per_cat) * TB).astype(jnp.int32)
    sort_start = (jnp.cumsum(counts) - counts).astype(jnp.int32)
    rank = jnp.arange(B, dtype=jnp.int32) - sort_start[cat_sorted]
    dest_slot = (pad_start[cat_sorted] + rank).astype(jnp.int32)        # padded item slot

    # Padding slots default to the last sorted item so tail tiles keep the same
    # category (no extra weight DMA) and never read garbage categories.
    src = jnp.full((B_pad,), order[-1], dtype=jnp.int32).at[dest_slot].set(order)
    slot_of_item = jnp.zeros((B,), jnp.int32).at[order].set(dest_slot)
    tile_cat = cat_ids[src[::TB]].astype(jnp.int32)                     # (num_tiles,)

    # ---------------- Build grouped bf16 LHS: concat([pre, upd_row], -1). ----------------
    upd_e = jnp.broadcast_to(upd[:, None, :], (B, N, D))
    combined = jnp.concatenate(
        [pre_vlm_emb.astype(jnp.float32), upd_e], axis=-1
    ).astype(jnp.bfloat16)                                              # (B, N, 2D)
    x_rows = combined[src].reshape(num_tiles * TM, 2 * D)               # padded, grouped

    ln2 = jnp.stack([params["fus_g"][0], params["fus_b"][0]]).astype(jnp.float32)

    # ---------------- VMEM budget: actual working set vs chip capacity. ----------------
    out_itm = jnp.dtype(pre_dtype).itemsize
    block_bytes = (
        TM * 2 * D * 2            # LHS tile (bf16)
        + 2 * D * D * 2           # fusion weight (bf16)
        + TM * D * out_itm        # output tile
        + 3 * D * 4               # bias + packed LN params
    )
    need = 2 * block_bytes + (1 << 20)                        # double-buffered + margin
    try:
        cap = int(pltpu.get_tpu_info().vmem_capacity_bytes)
    except Exception:
        cap = 64 * 2 ** 20                                    # safe on every generation
    vmem_limit = int(min(max(need, 32 * 2 ** 20), int(0.85 * cap)))

    grid_spec = pltpu.PrefetchScalarGridSpec(
        num_scalar_prefetch=1,
        grid=(num_tiles,),
        in_specs=[
            pl.BlockSpec((TM, 2 * D), lambda t, tc: (t, 0)),            # grouped LHS
            pl.BlockSpec((1, 2 * D, D), lambda t, tc: (tc[t], 0, 0)),   # fusion W[cat]
            pl.BlockSpec((1, 1, D), lambda t, tc: (tc[t], 0, 0)),       # fusion b[cat]
            pl.BlockSpec((2, D), lambda t, tc: (0, 0)),                 # fus_g / fus_b
        ],
        out_specs=pl.BlockSpec((TM, D), lambda t, tc: (t, 0)),
    )

    out_pad = pl.pallas_call(
        fused_group_kernel,
        grid_spec=grid_spec,
        out_shape=jax.ShapeDtypeStruct((num_tiles * TM, D), pre_dtype),
        compiler_params=pltpu.CompilerParams(
            dimension_semantics=("parallel",),
            vmem_limit_bytes=vmem_limit,
        ),
    )(tile_cat, x_rows, params["fusion_W"], params["fusion_b"], ln2)

    # Un-permute back to the original batch order (item-level gather only).
    return out_pad.reshape(B_pad, N, D)[slot_of_item]


def init_params(key, num_categories, vlm_dim, emb_dim, weight_dtype=jnp.bfloat16):
    k1, k2 = jax.random.split(key)
    # img_projection: xavier_uniform(gain=0.01) as in _init_weights; stored (emb_dim, vlm_dim)
    bound = 0.01 * math.sqrt(6.0 / (emb_dim + vlm_dim))
    proj_W = jax.random.uniform(k1, (emb_dim, vlm_dim), jnp.float32, -bound, bound)
    # fusion: CategorySpecificLinear (W = 0.02*randn, b = 0); full (2D, D) weight.
    fusion_W = 0.02 * jax.random.normal(k2, (num_categories, 2 * vlm_dim, vlm_dim), jnp.float32)
    return {
        "proj_W": proj_W.astype(weight_dtype),
        "proj_b": jnp.zeros((1, vlm_dim), jnp.float32),
        "img_g": jnp.ones((1, vlm_dim), jnp.float32),
        "img_b": jnp.zeros((1, vlm_dim), jnp.float32),
        "att_g": jnp.ones((1, vlm_dim), jnp.float32),
        "att_b": jnp.zeros((1, vlm_dim), jnp.float32),
        "fusion_W": fusion_W.astype(weight_dtype),
        "fusion_b": jnp.zeros((num_categories, 1, vlm_dim), jnp.float32),
        "fus_g": jnp.ones((1, vlm_dim), jnp.float32),
        "fus_b": jnp.zeros((1, vlm_dim), jnp.float32),
    }


def vlm_updater_ref(obs_feat, pre_vlm_emb, cat_ids, params):
    """Pure-JAX f32 reference mirroring the PyTorch forward (full, non-simplified attention)."""
    B, N, D = pre_vlm_emb.shape

    def ln(x, g, b):
        mu = jnp.mean(x, -1, keepdims=True)
        var = jnp.mean((x - mu) ** 2, -1, keepdims=True)
        return (x - mu) / jnp.sqrt(var + LN_EPS) * g[0] + b[0]

    W_proj = params["proj_W"].astype(jnp.float32)
    img = obs_feat[:, 0, :].astype(jnp.float32)
    img_vlm = ln(img @ W_proj + params["proj_b"][0], params["img_g"], params["img_b"])

    q = jnp.clip(pre_vlm_emb.astype(jnp.float32), -10.0, 10.0)
    kv = jnp.clip(jnp.broadcast_to(img_vlm[:, None, :], (B, N, D)), -10.0, 10.0)
    scores = jnp.clip(jnp.einsum("bnd,bmd->bnm", q, kv) / math.sqrt(D), -10.0, 10.0)
    attn = jax.nn.softmax(scores, axis=-1)
    upd = jnp.clip(jnp.clip(jnp.einsum("bnm,bmd->bnd", attn, kv), -10.0, 10.0) * 100.0,
                   -1000.0, 1000.0).astype(pre_vlm_emb.dtype)
    upd = ln(upd.astype(jnp.float32), params["att_g"], params["att_b"])

    W = params["fusion_W"].astype(jnp.float32)[cat_ids]                # (B, 2D, D)
    b = params["fusion_b"].astype(jnp.float32)[cat_ids][:, 0, :]       # (B, D)
    combined = jnp.concatenate([pre_vlm_emb.astype(jnp.float32), upd], axis=-1)
    fused = jnp.einsum("bnk,bkd->bnd", combined, W) + b[:, None, :]
    return ln(fused, params["fus_g"], params["fus_b"]).astype(pre_vlm_emb.dtype)


if __name__ == "__main__":
    B, N = 2, 8
    emb_dim, vlm_dim = 32, 32
    num_categories = 4

    key = jax.random.PRNGKey(0)
    k_obs, k_pre, k_cat, k_par = jax.random.split(key, 4)

    obs_feat = jax.random.normal(k_obs, (B, 1, emb_dim), jnp.float32)      # ObsEncoder output
    pre_vlm_emb = jax.random.normal(k_pre, (B, N, vlm_dim), jnp.float32)
    cat_ids = jax.random.randint(k_cat, (B,), 0, num_categories, jnp.int32)
    params = init_params(k_par, num_categories, vlm_dim, emb_dim)

    out = vlm_updater(obs_feat, pre_vlm_emb, cat_ids, params)
    out = jax.block_until_ready(out)

    ref = vlm_updater_ref(obs_feat, pre_vlm_emb, cat_ids, params)
    assert out.shape == (B, N, vlm_dim)
    max_err = float(jnp.max(jnp.abs(out.astype(jnp.float32) - ref.astype(jnp.float32))))
    # bf16 MXU operands vs f32 reference -> loosened tolerance (see header note).
    assert jnp.allclose(out, ref, atol=5e-2, rtol=5e-2), (
        f"mismatch vs pure-JAX reference (max abs err {max_err:.4e})")

    print("KERNEL_OK")
</pallas_src>

<mosaic_0001>
module attributes {stable_mosaic.version = 11 : i64} {
  func.func @img_upd_kernel(%arg0: i32, %arg1: memref<2x32xf32, #tpu.memory_space<vmem>>, %arg2: memref<32x32xbf16, #tpu.memory_space<vmem>>, %arg3: memref<5x32xf32, #tpu.memory_space<vmem>>, %arg4: memref<2x32xf32, #tpu.memory_space<vmem>>) attributes {dimension_semantics = [#tpu.dimension_semantics<parallel>], iteration_bounds = array<i64: 1>, scalar_prefetch = 0 : i64, scratch_operands = 0 : i64, tpu.core_type = #tpu.core_type<tc>, window_params = [{transform_indices = @transform_0, window_bounds = array<i64: 2, 32>}, {pipeline_mode = #tpu.pipeline_mode<synchronous>, transform_indices = @transform_1, window_bounds = array<i64: 32, 32>}, {pipeline_mode = #tpu.pipeline_mode<synchronous>, transform_indices = @transform_2, window_bounds = array<i64: 5, 32>}, {transform_indices = @transform_3, window_bounds = array<i64: 2, 32>}]} {
    %c0 = arith.constant 0 : index
    %c0_0 = arith.constant 0 : index
    %0 = vector.load %arg3[%c0, %c0_0] : memref<5x32xf32, #tpu.memory_space<vmem>>, vector<5x32xf32>
    %c0_1 = arith.constant 0 : index
    %c0_2 = arith.constant 0 : index
    %1 = vector.load %arg1[%c0_1, %c0_2] : memref<2x32xf32, #tpu.memory_space<vmem>>, vector<2x32xf32>
    %2 = arith.truncf %1 : vector<2x32xf32> to vector<2x32xbf16>
    %c0_3 = arith.constant 0 : index
    %c0_4 = arith.constant 0 : index
    %3 = vector.load %arg2[%c0_3, %c0_4] : memref<32x32xbf16, #tpu.memory_space<vmem>>, vector<32x32xbf16>
    %cst = arith.constant dense<0.000000e+00> : vector<2x32xf32>
    %4 = tpu.matmul %2, %3, %cst {dimension_numbers = #tpu.dot_dimension_numbers<[1], [0], [0], [1], [0, 0, 1, 1], [], []>} : vector<2x32xbf16>, vector<32x32xbf16>, vector<2x32xf32> -> vector<2x32xf32>
    %5 = vector.extract_strided_slice %0 {offsets = [0, 0], sizes = [1, 32], strides = [1, 1]} : vector<5x32xf32> to vector<1x32xf32>
    %6 = vector.broadcast %5 : vector<1x32xf32> to vector<2x32xf32>
    %7 = arith.addf %4, %6 : vector<2x32xf32>
    %8 = vector.extract_strided_slice %0 {offsets = [1, 0], sizes = [1, 32], strides = [1, 1]} : vector<5x32xf32> to vector<1x32xf32>
    %9 = vector.extract_strided_slice %0 {offsets = [2, 0], sizes = [1, 32], strides = [1, 1]} : vector<5x32xf32> to vector<1x32xf32>
    %cst_5 = arith.constant dense<0.000000e+00> : vector<2xf32>
    %10 = vector.multi_reduction <add>, %7, %cst_5 [1] : vector<2x32xf32> to vector<2xf32>
    %11 = vector.shape_cast %10 : vector<2xf32> to vector<2x1xf32>
    %cst_6 = arith.constant 3.200000e+01 : f32
    %12 = vector.broadcast %cst_6 : f32 to vector<2x1xf32>
    %13 = arith.divf %11, %12 : vector<2x1xf32>
    %14 = arith.mulf %7, %7 : vector<2x32xf32>
    %cst_7 = arith.constant dense<0.000000e+00> : vector<2xf32>
    %15 = vector.multi_reduction <add>, %14, %cst_7 [1] : vector<2x32xf32> to vector<2xf32>
    %16 = vector.shape_cast %15 : vector<2xf32> to vector<2x1xf32>
    %cst_8 = arith.constant 3.200000e+01 : f32
    %17 = vector.broadcast %cst_8 : f32 to vector<2x1xf32>
    %18 = arith.divf %16, %17 : vector<2x1xf32>
    %19 = arith.mulf %13, %13 : vector<2x1xf32>
    %20 = arith.subf %18, %19 : vector<2x1xf32>
    %cst_9 = arith.constant 0.000000e+00 : f32
    %21 = vector.broadcast %cst_9 : f32 to vector<2x1xf32>
    %22 = arith.maximumf %20, %21 : vector<2x1xf32>
    %23 = vector.broadcast %13 : vector<2x1xf32> to vector<2x32xf32>
    %24 = arith.subf %7, %23 : vector<2x32xf32>
    %cst_10 = arith.constant 9.99999974E-6 : f32
    %25 = vector.broadcast %cst_10 : f32 to vector<2x1xf32>
    %26 = arith.addf %22, %25 : vector<2x1xf32>
    %27 = math.rsqrt %26 : vector<2x1xf32>
    %28 = vector.broadcast %27 : vector<2x1xf32> to vector<2x32xf32>
    %29 = arith.mulf %24, %28 : vector<2x32xf32>
    %30 = vector.broadcast %8 : vector<1x32xf32> to vector<2x32xf32>
    %31 = arith.mulf %29, %30 : vector<2x32xf32>
    %32 = vector.broadcast %9 : vector<1x32xf32> to vector<2x32xf32>
    %33 = arith.addf %31, %32 : vector<2x32xf32>
    %cst_11 = arith.constant -1.000000e+01 : f32
    %cst_12 = arith.constant 1.000000e+01 : f32
    %34 = vector.broadcast %cst_11 : f32 to vector<2x32xf32>
    %35 = arith.maximumf %34, %33 : vector<2x32xf32>
    %36 = vector.broadcast %cst_12 : f32 to vector<2x32xf32>
    %37 = arith.minimumf %36, %35 : vector<2x32xf32>
    %cst_13 = arith.constant 1.000000e+02 : f32
    %38 = vector.broadcast %cst_13 : f32 to vector<2x32xf32>
    %39 = arith.mulf %37, %38 : vector<2x32xf32>
    %cst_14 = arith.constant -1.000000e+03 : f32
    %cst_15 = arith.constant 1.000000e+03 : f32
    %40 = vector.broadcast %cst_14 : f32 to vector<2x32xf32>
    %41 = arith.maximumf %40, %39 : vector<2x32xf32>
    %42 = vector.broadcast %cst_15 : f32 to vector<2x32xf32>
    %43 = arith.minimumf %42, %41 : vector<2x32xf32>
    %44 = vector.extract_strided_slice %0 {offsets = [3, 0], sizes = [1, 32], strides = [1, 1]} : vector<5x32xf32> to vector<1x32xf32>
    %45 = vector.extract_strided_slice %0 {offsets = [4, 0], sizes = [1, 32], strides = [1, 1]} : vector<5x32xf32> to vector<1x32xf32>
    %cst_16 = arith.constant dense<0.000000e+00> : vector<2xf32>
    %46 = vector.multi_reduction <add>, %43, %cst_16 [1] : vector<2x32xf32> to vector<2xf32>
    %47 = vector.shape_cast %46 : vector<2xf32> to vector<2x1xf32>
    %cst_17 = arith.constant 3.200000e+01 : f32
    %48 = vector.broadcast %cst_17 : f32 to vector<2x1xf32>
    %49 = arith.divf %47, %48 : vector<2x1xf32>
    %50 = arith.mulf %43, %43 : vector<2x32xf32>
    %cst_18 = arith.constant dense<0.000000e+00> : vector<2xf32>
    %51 = vector.multi_reduction <add>, %50, %cst_18 [1] : vector<2x32xf32> to vector<2xf32>
    %52 = vector.shape_cast %51 : vector<2xf32> to vector<2x1xf32>
    %cst_19 = arith.constant 3.200000e+01 : f32
    %53 = vector.broadcast %cst_19 : f32 to vector<2x1xf32>
    %54 = arith.divf %52, %53 : vector<2x1xf32>
    %55 = arith.mulf %49, %49 : vector<2x1xf32>
    %56 = arith.subf %54, %55 : vector<2x1xf32>
    %cst_20 = arith.constant 0.000000e+00 : f32
    %57 = vector.broadcast %cst_20 : f32 to vector<2x1xf32>
    %58 = arith.maximumf %56, %57 : vector<2x1xf32>
    %59 = vector.broadcast %49 : vector<2x1xf32> to vector<2x32xf32>
    %60 = arith.subf %43, %59 : vector<2x32xf32>
    %cst_21 = arith.constant 9.99999974E-6 : f32
    %61 = vector.broadcast %cst_21 : f32 to vector<2x1xf32>
    %62 = arith.addf %58, %61 : vector<2x1xf32>
    %63 = math.rsqrt %62 : vector<2x1xf32>
    %64 = vector.broadcast %63 : vector<2x1xf32> to vector<2x32xf32>
    %65 = arith.mulf %60, %64 : vector<2x32xf32>
    %66 = vector.broadcast %44 : vector<1x32xf32> to vector<2x32xf32>
    %67 = arith.mulf %65, %66 : vector<2x32xf32>
    %68 = vector.broadcast %45 : vector<1x32xf32> to vector<2x32xf32>
    %69 = arith.addf %67, %68 : vector<2x32xf32>
    %c0_22 = arith.constant 0 : index
    %c0_23 = arith.constant 0 : index
    %70 = vector.load %arg4[%c0_22, %c0_23] : memref<2x32xf32, #tpu.memory_space<vmem>>, vector<2x32xf32>
    tpu.vector_store %arg4[%c0_22, %c0_23], %69 {strides = array<i32>} : memref<2x32xf32, #tpu.memory_space<vmem>>, vector<2x32xf32>,
    return
  }
  func.func @transform_0(%arg0: i32) -> (i32, i32) {
    %c0_i32 = arith.constant 0 : i32
    %c0_i32_0 = arith.constant 0 : i32
    return %arg0, %c0_i32 : i32, i32
  }
  func.func @transform_1(%arg0: i32) -> (i32, i32) {
    %c0_i32 = arith.constant 0 : i32
    %c0_i32_0 = arith.constant 0 : i32
    %c0_i32_1 = arith.constant 0 : i32
    return %c0_i32, %c0_i32_0 : i32, i32
  }
  func.func @transform_2(%arg0: i32) -> (i32, i32) {
    %c0_i32 = arith.constant 0 : i32
    %c0_i32_0 = arith.constant 0 : i32
    %c0_i32_1 = arith.constant 0 : i32
    return %c0_i32, %c0_i32_0 : i32, i32
  }
  func.func @transform_3(%arg0: i32) -> (i32, i32) {
    %c0_i32 = arith.constant 0 : i32
    %c0_i32_0 = arith.constant 0 : i32
    return %arg0, %c0_i32 : i32, i32
  }
}

</mosaic_0001>

<llo_original>
// kernel: tpu_custom_call.1
$region0: #{tpu_custom_call.1}
  #allocation0 [shape = 'u32[]', space=smem, size = 0x4, offset = 0x4, fixed_abs, tag = 'smem constant byte address 0x4 - core index']
  #allocation1 [shape = 'u32[72,128]{1,0:T(1,128)}', space=vmem, size = 0x9000, scoped, tag = 'internal scratch']
  %s0 = inlined_call_operand.hbm [shape: f32[2,32], index: 0, kind: input, shape index: {}]
  %s1 = inlined_call_operand.hbm [shape: bf16[32,32], index: 1, kind: input, shape index: {}]
  %s2 = inlined_call_operand.hbm [shape: f32[5,32], index: 2, kind: input, shape index: {}]
  %s3 = inlined_call_operand.hbm [shape: f32[2,32], index: 3, kind: output, shape index: {}]
  %s4 = sld [smem:[#allocation0]]
  $region34: #{tpu_custom_call.1} parent=0
    _
  %s6 = ssub.s32 1, %s4
  %s7 = scalar_select 0, %s6, %s4
  $region1: #{tpu_custom_call.1} parent=0
    #allocation2 [shape = 'u8[1024]{0}', space=vmem, size = 0x400, scoped, tag = 'input window, operand 0, single buffered']
    #allocation3 [shape = 's32[1]{0}', space=sflag, size = 0x4, scoped, tag = 'scoped memory for tpu_custom_call.1']
    #allocation4 [shape = 's32[1]{0}', space=sflag, size = 0x4, scoped, tag = 'scoped memory for tpu_custom_call.1']
    #allocation5 [shape = 'u8[8192]{0}', space=vmem, size = 0x2000, scoped, tag = 'input window, operand 1, single buffered']
    #allocation6 [shape = 's32[1]{0}', space=sflag, size = 0x4, scoped, tag = 'scoped memory for tpu_custom_call.1']
    #allocation7 [shape = 'u8[4096]{0}', space=vmem, size = 0x1000, scoped, tag = 'input window, operand 2, single buffered']
    #allocation8 [shape = 'u8[1024]{0}', space=vmem, size = 0x400, scoped, tag = 'output window, operand 0, single buffered']
    %8 = vsyncpa [#allocation3], 0
    %9 = vsyncpa [#allocation6], 0
    %10 = vsyncpa [#allocation4], 0
    // Predicated region
    $region2: #{tpu_custom_call.1} parent=1 // pred_check
      _
    $region3: #{tpu_custom_call.1} parent=1 // pred_check_branch
      %12 = sbr.rel (0) target = $region5
    $region4: #{tpu_custom_call.1} parent=1 // pred_region
      %14 = vsyncadd [#allocation3], 0
      %s16 = sshll.u32 %s0, 4
      %s17 = int_to_ptr.hbm [resolvable:$true] %s16
      %s18 = sshll.u32 [#allocation2], 4
      %s19 = int_to_ptr.vmem [resolvable:$true] %s18
      %21 = dma.hbm_to_vmem [thread:$0]  %s17, 32, %s19, [#allocation3]
    $region5: #{tpu_custom_call.1} parent=1 // pred_fallthru
      _
    // Predicated region
    $region6: #{tpu_custom_call.1} parent=1 // pred_check
      _
    $region7: #{tpu_custom_call.1} parent=1 // pred_check_branch
      %23 = sbr.rel (0) target = $region9
    $region8: #{tpu_custom_call.1} parent=1 // pred_region
      %25 = vsyncadd [#allocation6], 0
      %s26 = sshll.u32 %s1, 4
      %s27 = int_to_ptr.hbm [resolvable:$true] %s26
      %s28 = sshll.u32 [#allocation5], 4
      %s29 = int_to_ptr.vmem [resolvable:$true] %s28
      %34 = dma.hbm_to_vmem [thread:$0]  %s27, 256, %s29, [#allocation6], 64, 64, 4
    $region9: #{tpu_custom_call.1} parent=1 // pred_fallthru
      _
    // Predicated region
    $region10: #{tpu_custom_call.1} parent=1 // pred_check
      _
    $region11: #{tpu_custom_call.1} parent=1 // pred_check_branch
      %36 = sbr.rel (0) target = $region13
    $region12: #{tpu_custom_call.1} parent=1 // pred_region
      %38 = vsyncadd [#allocation6], 0
      %s40 = sshll.u32 %s2, 4
      %s41 = int_to_ptr.hbm [resolvable:$true] %s40
      %s42 = sshll.u32 [#allocation7], 4
      %s43 = int_to_ptr.vmem [resolvable:$true] %s42
      %45 = dma.hbm_to_vmem [thread:$0]  %s41, 128, %s43, [#allocation6]
    $region13: #{tpu_custom_call.1} parent=1 // pred_fallthru
      _
    // Predicated region
    $region14: #{tpu_custom_call.1} parent=1 // pred_check
      _
    $region15: #{tpu_custom_call.1} parent=1 // pred_check_branch
      %47 = sbr.rel (0) target = $region17
    $region16: #{tpu_custom_call.1} parent=1 // pred_region
      %49 = dma.done [#allocation3], 32
    $region17: #{tpu_custom_call.1} parent=1 // pred_fallthru
      _
    // Predicated region
    $region18: #{tpu_custom_call.1} parent=1 // pred_check
      _
    $region19: #{tpu_custom_call.1} parent=1 // pred_check_branch
      %51 = sbr.rel (0) target = $region21
    $region20: #{tpu_custom_call.1} parent=1 // pred_region
      %53 = dma.done [#allocation6], 256
    $region21: #{tpu_custom_call.1} parent=1 // pred_fallthru
      _
    // Predicated region
    $region22: #{tpu_custom_call.1} parent=1 // pred_check
      _
    $region23: #{tpu_custom_call.1} parent=1 // pred_check_branch
      %55 = sbr.rel (0) target = $region25
    $region24: #{tpu_custom_call.1} parent=1 // pred_region
      %57 = dma.done [#allocation6], 128
    $region25: #{tpu_custom_call.1} parent=1 // pred_fallthru
      _
    %v59 = vld [vmem:[#allocation7] sm:$0x1f]
    %v60 = vld [vmem:[#allocation2] sm:$0x3]
    %v61 = vpack.c.bf16 %v60, %v60
    %v62 = vld [vmem:[#allocation5] sm:$0xf]
    %v63 = vld [vmem:[#allocation5 + $0x4] sm:$0xf]
    %v64 = vld [vmem:[#allocation5 + $0x8] sm:$0xf]
    %v65 = vld [vmem:[#allocation5 + $0xc] sm:$0xf]
    %v66 = vperm.slane %v59, 0
    %v71 = vunpack.c.l.b16 %v62
    %v72 = vunpack.c.l.b16 %v63
    %v73 = vunpack.c.l.b16 %v64
    %v74 = vunpack.c.l.b16 %v65
    %v75 = vpack.c.b16 %v72, %v71
    %v76 = vpack.c.b16 %v74, %v73
    %vm79 = vcmask 261120
    %v81 = vsel %vm79, %v61, 0
    %83 = vmatpush.bf16.msra.mxu0 0
    %84 = vmatpush.bf16.msra.mxu0 0
    %85 = vmatpush.bf16.msra.mxu0 0
    %86 = vmatpush.bf16.msra.mxu0 0
    %87 = vmatpush.bf16.msra.mxu0 0
    %88 = vmatpush.bf16.msra.mxu0 0
    %89 = vmatpush.bf16.msra.mxu0 %v76
    %90 = vmatpush.bf16.msra.mxu0 %v75
    %91 = vmatmul.bf16.gmra.mxu0 %v81
    %v92 = vpop.f32.mrf.mxu0
    %v93 = vadd.f32 %v66, %v92
    %v94 = vpop.f32.mrf.mxu0
    %95 = vdwg.mxu0
    %vm96 = vcmask 254976
    %v97 = vsel %vm96, %v93, 0.0
    %98 = vadd.xlane.f32.xlu0 %v97
    %v99 = vpop.xlane.xlu0 %98
    %v100 = vrcp.pop 32.0
    %v101 = vmul.f32 32.0, %v100
    %v102 = vsub.f32 1.0, %v101
    %v103 = vmul.f32 %v100, %v102
    %v104 = vadd.f32 %v100, %v103
    %vm105 = vweird.f32 %v100
    %v106 = vsel %vm105, %v100, %v104
    %v107 = vmul.f32 %v99, %v106
    %v108 = vmul.f32 %v93, %v93
    %v109 = vsel %vm96, %v108, 0.0
    %110 = vadd.xlane.f32.xlu0 %v109
    %v111 = vpop.xlane.xlu0 %110
    %v112 = vmul.f32 %v111, %v106
    %v113 = vmul.f32 %v107, %v107
    %v114 = vsub.f32 %v112, %v113
    %v115 = vmax.f32 %v114, 0.0
    %v116 = vsub.f32 %v93, %v107
    %v117 = vadd.f32 %v115, 1e-05
    %v118 = vrsqrt.pop %v117
    %v119 = vmul.f32 %v118, %v117
    %v120 = vmul.f32 %v119, %v118
    %v121 = vmul.f32 0.5, %v120
    %v122 = vsub.f32 1.5, %v121
    %v123 = vmul.f32 %v118, %v122
    %vm124 = vweird.f32 %v117
    %vm125 = vweird.f32 %v118
    %vm126 = vmor %vm124, %vm125
    %v127 = vsel %vm126, %v118, %v123
    %v128 = vmul.f32 %v116, %v127
    %v129 = vperm.slane %v59, 1
    %v130 = vmul.f32 %v128, %v129
    %v131 = vperm.slane %v59, 2
    %v132 = vadd.f32 %v130, %v131
    %v133 = vmax.f32 %v132, -10.0
    %v134 = vmin.f32 %v133, 10.0
    %v135 = vmul.f32 %v134, 100.0
    %v136 = vmax.f32 %v135, -1000.0
    %v137 = vmin.f32 %v136, 1000.0
    %v138 = vsel %vm96, %v137, 0.0
    %139 = vadd.xlane.f32.xlu0 %v138
    %v140 = vpop.xlane.xlu0 %139
    %v141 = vmul.f32 %v140, %v106
    %v142 = vmul.f32 %v137, %v137
    %v143 = vsel %vm96, %v142, 0.0
    %144 = vadd.xlane.f32.xlu0 %v143
    %v145 = vpop.xlane.xlu0 %144
    %v146 = vmul.f32 %v145, %v106
    %v147 = vmul.f32 %v141, %v141
    %v148 = vsub.f32 %v146, %v147
    %v149 = vmax.f32 %v148, 0.0
    %v150 = vsub.f32 %v137, %v141
    %v151 = vadd.f32 %v149, 1e-05
    %v152 = vrsqrt.pop %v151
    %v153 = vmul.f32 %v152, %v151
    %v154 = vmul.f32 %v153, %v152
    %v155 = vmul.f32 0.5, %v154
    %v156 = vsub.f32 1.5, %v155
    %v157 = vmul.f32 %v152, %v156
    %vm158 = vweird.f32 %v151
    %vm159 = vweird.f32 %v152
    %vm160 = vmor %vm158, %vm159
    %v161 = vsel %vm160, %v152, %v157
    %v162 = vmul.f32 %v150, %v161
    %v163 = vperm.slane %v59, 3
    %v164 = vmul.f32 %v162, %v163
    %v165 = vperm.slane %v59, 4
    %v166 = vadd.f32 %v164, %v165
    %167 = vst.msk [vmem:[#allocation8] sm:$0x3] %vm96, %v166
    // Predicated region
    $region26: #{tpu_custom_call.1} parent=1 // pred_check
      _
    $region27: #{tpu_custom_call.1} parent=1 // pred_check_branch
      %169 = sbr.rel (0) target = $region29
    $region28: #{tpu_custom_call.1} parent=1 // pred_region
      %171 = vsyncadd [#allocation4], 0
      %s173 = sshll.u32 [#allocation8], 4
      %s174 = int_to_ptr.vmem [resolvable:$true] %s173
      %s175 = sshll.u32 %s3, 4
      %s176 = int_to_ptr.hbm [resolvable:$true] %s175
      %178 = dma.vmem_to_hbm [thread:$0]  %s174, 32, %s176, [#allocation4]
    $region29: #{tpu_custom_call.1} parent=1 // pred_fallthru
      _
    // Predicated region
    $region30: #{tpu_custom_call.1} parent=1 // pred_check
      _
    $region31: #{tpu_custom_call.1} parent=1 // pred_check_branch
      %180 = sbr.rel (0) target = $region33
    $region32: #{tpu_custom_call.1} parent=1 // pred_region
      %182 = dma.done [#allocation4], 32
    $region33: #{tpu_custom_call.1} parent=1 // pred_fallthru
      _
    %183 = vsyncpa [#allocation3], 1
    %184 = vsyncpa [#allocation6], 1
    %185 = vsyncpa [#allocation4], 1

</llo_original>
